<compile_context>
chip_gen: v5e
topology: v5e:2x2
jax: 0.10.0
libtpu: 0.0.40
codegen_flags: <defaults>
</compile_context>

<pallas_src>
import functools

import jax
import jax.numpy as jnp
from jax.experimental import pallas as pl
from jax.experimental.pallas import tpu as pltpu

_PDIST_EPS = 1e-6               # torch PairwiseDistance default eps
_MIN_PALLAS_BYTES = 128 * 1024  # below this, plain fused XLA beats a pallas launch


def _triplet_loss_kernel(a_ref, p_ref, n_ref, o_ref, *, margin, batch, block_rows):
    i = pl.program_id(0)

    # Tiles arrive in native dtype; upcast to f32 on the VPU (free under DMA).
    a = a_ref[...].astype(jnp.float32)
    p = p_ref[...].astype(jnp.float32)
    n = n_ref[...].astype(jnp.float32)

    # PairwiseDistance(2): ||a - x + eps||_2 along the feature (lane) axis.
    # Lane-axis sum runs on the XLU and sqrt on the EUP -> different VLIW slots
    # from the VPU sub/square stream; effectively free under the HBM cost.
    dpos = jnp.sqrt(jnp.sum((a - p + _PDIST_EPS) ** 2, axis=-1, keepdims=True))  # (TB,1)
    dneg = jnp.sqrt(jnp.sum((a - n + _PDIST_EPS) ** 2, axis=-1, keepdims=True))  # (TB,1)

    hinge = jnp.maximum(jnp.float32(margin) + (dpos - dneg), 0.0)                # (TB,1)

    # Zero out rows past the true batch (last block may be partial: Pallas
    # fetches only the valid rows; the tail of the VMEM tile is unspecified but
    # never crosses into valid rows, and jnp.where drops any NaN/Inf there).
    row = i * block_rows + jax.lax.broadcasted_iota(jnp.int32, hinge.shape, 0)
    hinge = jnp.where(row < batch, hinge, 0.0)

    # Broadcast this block's partial sum across one (8,128) vreg tile:
    # lane-dense, unmasked store; wrapper picks element [0,0] per block.
    o_ref[...] = jnp.broadcast_to(jnp.sum(hinge), o_ref.shape)


def _pick_block_rows(batch, d, itemsize):
    # Sublane packing granule: 8 rows f32, 16 rows bf16, 32 rows for 1-byte types.
    granule = 8 * max(1, 4 // itemsize)
    # Keep 3 inputs x 2 pipeline buffers x (TB * D * itemsize) around ~12 MiB,
    # comfortably under the default scoped-VMEM limit on every generation.
    budget = 12 * 1024 * 1024
    tb = budget // (3 * 2 * d * itemsize)
    tb = max(granule, min(1024, (tb // granule) * granule))
    # No point tiling past the (granule-rounded) batch.
    batch_ceil = ((batch + granule - 1) // granule) * granule
    return min(tb, batch_ceil)


def _triplet_loss_pallas(anchor, positive, negative, margin, *, block_rows=None):
    B, D = anchor.shape
    itemsize = jnp.dtype(anchor.dtype).itemsize
    granule = 8 * max(1, 4 // itemsize)

    if block_rows is None:
        tb = _pick_block_rows(B, D, itemsize)
    else:
        tb = max(granule, (int(block_rows) + granule - 1) // granule * granule)

    num_blocks = pl.cdiv(B, tb)
    # TODO(synk): for very large D (multi-thousand), add a second "arbitrary"
    # grid axis over the feature dim with a (TB, 1) f32 squared-distance
    # accumulator instead of full-D rows per tile.

    kernel = functools.partial(
        _triplet_loss_kernel, margin=float(margin), batch=B, block_rows=tb
    )

    partial = pl.pallas_call(
        kernel,
        out_shape=jax.ShapeDtypeStruct((num_blocks, 8, 128), jnp.float32),
        grid=(num_blocks,),
        in_specs=[
            pl.BlockSpec((tb, D), lambda i: (i, 0)),
            pl.BlockSpec((tb, D), lambda i: (i, 0)),
            pl.BlockSpec((tb, D), lambda i: (i, 0)),
        ],
        out_specs=pl.BlockSpec((1, 8, 128), lambda i: (i, 0, 0)),
        compiler_params=pltpu.CompilerParams(
            dimension_semantics=("parallel",),
        ),
    )(anchor, positive, negative)

    # One scalar partial sum per block (replicated across its vreg tile).
    return jnp.sum(partial[:, 0, 0]) / jnp.float32(B)


def triplet_loss(anchor, positive, negative, margin, *, block_rows=None):
    """TripletLoss.forward. Returns a scalar f32 loss."""
    assert anchor.shape == positive.shape == negative.shape
    assert anchor.ndim == 2
    B, D = anchor.shape
    total_bytes = 3 * B * D * jnp.dtype(anchor.dtype).itemsize
    if block_rows is None and total_bytes < _MIN_PALLAS_BYTES:
        # Tiny inputs: pallas launch + DMA setup overhead dwarfs ~KBs of work;
        # plain fused XLA is faster.
        return _reference(anchor, positive, negative, margin)
    return _triplet_loss_pallas(
        anchor, positive, negative, margin, block_rows=block_rows
    )


def _reference(anchor, positive, negative, margin):
    # Pure-JAX reference matching torch semantics (also the tiny-input path).
    a = anchor.astype(jnp.float32)
    p = positive.astype(jnp.float32)
    n = negative.astype(jnp.float32)
    pos = jnp.sqrt(jnp.sum((a - p + _PDIST_EPS) ** 2, axis=-1))
    neg = jnp.sqrt(jnp.sum((a - n + _PDIST_EPS) ** 2, axis=-1))
    return jnp.mean(jnp.maximum(jnp.float32(margin) + pos - neg, 0.0))


if __name__ == "__main__":
    key = jax.random.PRNGKey(0)
    ks = jax.random.split(key, 9)
    margin = 0.2

    # 1) Tiny case -> pure-JAX fallback path (matches torch semantics).
    B, D = 8, 128
    a = jax.random.normal(ks[0], (B, D), jnp.float32)
    p = jax.random.normal(ks[1], (B, D), jnp.float32)
    n = jax.random.normal(ks[2], (B, D), jnp.float32)
    out = jax.block_until_ready(triplet_loss(a, p, n, margin))
    ref = _reference(a, p, n, margin)
    assert jnp.allclose(out, ref, atol=1e-5, rtol=1e-5), (out, ref)

    # 2) Pallas path, f32, batch NOT divisible by the tile -> exercises the
    #    batch grid, "parallel" partial sums, and partial-last-block masking
    #    (no wrapper-side padding/copy anymore).
    B, D = 100, 256
    a = jax.random.normal(ks[3], (B, D), jnp.float32)
    p = jax.random.normal(ks[4], (B, D), jnp.float32)
    n = jax.random.normal(ks[5], (B, D), jnp.float32)
    out = jax.block_until_ready(triplet_loss(a, p, n, margin, block_rows=32))
    ref = _reference(a, p, n, margin)
    assert jnp.allclose(out, ref, atol=1e-5, rtol=1e-5), (out, ref)

    # 3) Pallas path, bf16 inputs kept native through the DMA, upcast in-kernel.
    B, D = 64, 512
    a = jax.random.normal(ks[6], (B, D), jnp.float32).astype(jnp.bfloat16)
    p = jax.random.normal(ks[7], (B, D), jnp.float32).astype(jnp.bfloat16)
    n = jax.random.normal(ks[8], (B, D), jnp.float32).astype(jnp.bfloat16)
    out = jax.block_until_ready(triplet_loss(a, p, n, margin, block_rows=16))
    ref = _reference(a, p, n, margin)
    assert jnp.allclose(out, ref, atol=1e-4, rtol=1e-4), (out, ref)

    print("KERNEL_OK")
</pallas_src>

<mosaic_0001>
module attributes {stable_mosaic.version = 11 : i64} {
  func.func @_triplet_loss_kernel(%arg0: i32, %arg1: memref<32x256xf32, #tpu.memory_space<vmem>>, %arg2: memref<32x256xf32, #tpu.memory_space<vmem>>, %arg3: memref<32x256xf32, #tpu.memory_space<vmem>>, %arg4: memref<1x8x128xf32, #tpu.memory_space<vmem>>) attributes {dimension_semantics = [#tpu.dimension_semantics<parallel>], iteration_bounds = array<i64: 4>, scalar_prefetch = 0 : i64, scratch_operands = 0 : i64, tpu.core_type = #tpu.core_type<tc>, window_params = [{transform_indices = @transform_0, window_bounds = array<i64: 32, 256>}, {transform_indices = @transform_1, window_bounds = array<i64: 32, 256>}, {transform_indices = @transform_2, window_bounds = array<i64: 32, 256>}, {transform_indices = @transform_3, window_bounds = array<i64: 1, 8, 128>}]} {
    %c0 = arith.constant 0 : index
    %c0_0 = arith.constant 0 : index
    %0 = vector.load %arg1[%c0, %c0_0] : memref<32x256xf32, #tpu.memory_space<vmem>>, vector<32x256xf32>
    %c0_1 = arith.constant 0 : index
    %c0_2 = arith.constant 0 : index
    %1 = vector.load %arg2[%c0_1, %c0_2] : memref<32x256xf32, #tpu.memory_space<vmem>>, vector<32x256xf32>
    %c0_3 = arith.constant 0 : index
    %c0_4 = arith.constant 0 : index
    %2 = vector.load %arg3[%c0_3, %c0_4] : memref<32x256xf32, #tpu.memory_space<vmem>>, vector<32x256xf32>
    %3 = arith.subf %0, %1 : vector<32x256xf32>
    %cst = arith.constant 9.99999997E-7 : f32
    %4 = vector.broadcast %cst : f32 to vector<32x256xf32>
    %5 = arith.addf %3, %4 : vector<32x256xf32>
    %6 = arith.mulf %5, %5 : vector<32x256xf32>
    %cst_5 = arith.constant dense<0.000000e+00> : vector<32xf32>
    %7 = vector.multi_reduction <add>, %6, %cst_5 [1] : vector<32x256xf32> to vector<32xf32>
    %8 = vector.shape_cast %7 : vector<32xf32> to vector<32x1xf32>
    %9 = math.sqrt %8 : vector<32x1xf32>
    %10 = arith.subf %0, %2 : vector<32x256xf32>
    %cst_6 = arith.constant 9.99999997E-7 : f32
    %11 = vector.broadcast %cst_6 : f32 to vector<32x256xf32>
    %12 = arith.addf %10, %11 : vector<32x256xf32>
    %13 = arith.mulf %12, %12 : vector<32x256xf32>
    %cst_7 = arith.constant dense<0.000000e+00> : vector<32xf32>
    %14 = vector.multi_reduction <add>, %13, %cst_7 [1] : vector<32x256xf32> to vector<32xf32>
    %15 = vector.shape_cast %14 : vector<32xf32> to vector<32x1xf32>
    %16 = math.sqrt %15 : vector<32x1xf32>
    %17 = arith.subf %9, %16 : vector<32x1xf32>
    %cst_8 = arith.constant 2.000000e-01 : f32
    %18 = vector.broadcast %cst_8 : f32 to vector<32x1xf32>
    %19 = arith.addf %18, %17 : vector<32x1xf32>
    %cst_9 = arith.constant 0.000000e+00 : f32
    %20 = vector.broadcast %cst_9 : f32 to vector<32x1xf32>
    %21 = arith.maximumf %19, %20 : vector<32x1xf32>
    %c32_i32 = arith.constant 32 : i32
    %22 = arith.muli %arg0, %c32_i32 : i32
    %23 = tpu.iota {dimensions = array<i32: 0>} : vector<32x1xi32>
    %24 = vector.broadcast %22 : i32 to vector<32x1xi32>
    %25 = arith.addi %24, %23 : vector<32x1xi32>
    %c100_i32 = arith.constant 100 : i32
    %26 = vector.broadcast %c100_i32 : i32 to vector<32x1xi32>
    %27 = arith.cmpi slt, %25, %26 : vector<32x1xi32>
    %cst_10 = arith.constant 0.000000e+00 : f32
    %28 = vector.broadcast %cst_10 : f32 to vector<32x1xf32>
    %29 = arith.select %27, %21, %28 : vector<32x1xi1>, vector<32x1xf32>
    %30 = vector.shape_cast %29 : vector<32x1xf32> to vector<1x32x1xf32>
    %cst_11 = arith.constant dense<0.000000e+00> : vector<1xf32>
    %31 = vector.multi_reduction <add>, %30, %cst_11 [1, 2] : vector<1x32x1xf32> to vector<1xf32>
    %32 = vector.shape_cast %31 : vector<1xf32> to vector<1x1x1xf32>
    %33 = vector.extract %32[0, 0, 0] : f32 from vector<1x1x1xf32>
    %34 = vector.broadcast %33 : f32 to vector<1x8x128xf32>
    %c0_12 = arith.constant 0 : index
    %c0_13 = arith.constant 0 : index
    %c0_14 = arith.constant 0 : index
    %35 = vector.load %arg4[%c0_12, %c0_13, %c0_14] : memref<1x8x128xf32, #tpu.memory_space<vmem>>, vector<1x8x128xf32>
    tpu.vector_store %arg4[%c0_12, %c0_13, %c0_14], %34 {strides = array<i32>} : memref<1x8x128xf32, #tpu.memory_space<vmem>>, vector<1x8x128xf32>,
    return
  }
  func.func @transform_0(%arg0: i32) -> (i32, i32) {
    %c0_i32 = arith.constant 0 : i32
    %c0_i32_0 = arith.constant 0 : i32
    return %arg0, %c0_i32 : i32, i32
  }
  func.func @transform_1(%arg0: i32) -> (i32, i32) {
    %c0_i32 = arith.constant 0 : i32
    %c0_i32_0 = arith.constant 0 : i32
    return %arg0, %c0_i32 : i32, i32
  }
  func.func @transform_2(%arg0: i32) -> (i32, i32) {
    %c0_i32 = arith.constant 0 : i32
    %c0_i32_0 = arith.constant 0 : i32
    return %arg0, %c0_i32 : i32, i32
  }
  func.func @transform_3(%arg0: i32) -> (i32, i32, i32) {
    %c0_i32 = arith.constant 0 : i32
    %c0_i32_0 = arith.constant 0 : i32
    %c0_i32_1 = arith.constant 0 : i32
    return %arg0, %c0_i32, %c0_i32_0 : i32, i32, i32
  }
}

</mosaic_0001>

<llo_original>
// kernel: tpu_custom_call.1
$region0: #{tpu_custom_call.1}
  #allocation0 [shape = 'u32[]', space=smem, size = 0x4, offset = 0x4, fixed_abs, tag = 'smem constant byte address 0x4 - core index']
  #allocation1 [shape = 'u32[72,128]{1,0:T(1,128)}', space=vmem, size = 0x9000, scoped, tag = 'internal scratch']
  %s0 = inlined_call_operand.hbm [shape: f32[100,256], index: 0, kind: input, shape index: {}]
  %s1 = inlined_call_operand.hbm [shape: f32[100,256], index: 1, kind: input, shape index: {}]
  %s2 = inlined_call_operand.hbm [shape: f32[100,256], index: 2, kind: input, shape index: {}]
  %s3 = inlined_call_operand.hbm [shape: f32[4,8,128], index: 3, kind: output, shape index: {}]
  %s4 = sld [smem:[#allocation0]]
  $region57: #{tpu_custom_call.1} parent=0
    _
  %s6 = ssub.s32 1, %s4
  %s7 = scalar_select 0, %s6, %s4
  $region1: #{tpu_custom_call.1} parent=0
    #allocation2 [shape = 'u8[65536]{0}', space=vmem, size = 0x10000, scoped, tag = 'input window, operand 0']
    #allocation3 [shape = 's32[2]{0}', space=sflag, size = 0x8, scoped, tag = 'scoped memory for tpu_custom_call.1']
    #allocation4 [shape = 's32[2]{0}', space=sflag, size = 0x8, scoped, tag = 'scoped memory for tpu_custom_call.1']
    #allocation5 [shape = 'u8[65536]{0}', space=vmem, size = 0x10000, scoped, tag = 'input window, operand 1']
    #allocation6 [shape = 's32[2]{0}', space=sflag, size = 0x8, scoped, tag = 'scoped memory for tpu_custom_call.1']
    #allocation7 [shape = 'u8[65536]{0}', space=vmem, size = 0x10000, scoped, tag = 'input window, operand 2']
    #allocation8 [shape = 'u8[8192]{0}', space=vmem, size = 0x2000, scoped, tag = 'output window, operand 0']
    %8 = vsyncpa [#allocation3], 0
    %s9 = scalar_lea.sflag [#allocation3], 1
    %10 = vsyncpa %s9, 0
    %11 = vsyncpa [#allocation6], 0
    %s12 = scalar_lea.sflag [#allocation6], 1
    %13 = vsyncpa %s12, 0
    %14 = vsyncpa [#allocation4], 0
    %s15 = scalar_lea.sflag [#allocation4], 1
    %16 = vsyncpa %s15, 0
    loop: start=0, step=1, limit=6
    $region2: #{tpu_custom_call.1} parent=1 // loop_pre_header
      _
    $region3: #{tpu_custom_call.1} parent=1 // loop_header
      %s18 = sphi 0, %s22
      %p19 = scmp.ge.s32.totalorder %s18, 6
      %s28 = sphi 0, %s30
      %s31 = sphi 0, %s28
      %s32 = sphi 0, %s31
      %s48 = sphi 0, %s32
      %s54 = sphi 0, %s56
      %s57 = sphi 0, %s54
      %s58 = sphi 0, %s57
      %s74 = sphi 0, %s58
      %s80 = sphi 0, %s82
      %s83 = sphi 0, %s80
      %s84 = sphi 0, %s83
      %s100 = sphi 0, %s84
      %s106 = sphi 0, %s108
      %s109 = sphi 0, %s106
      %s110 = sphi 0, %s109
      %s126 = sphi 0, %s110
    $region4: #{tpu_custom_call.1} parent=1 // loop_header_branch
      %21 = sbr.rel (%p19) target = $region8
    $region5: #{tpu_custom_call.1} parent=1 // loop_body
      %s23 = ssub.s32 %s18, 1
      %s24 = ssub.s32 %s18, 2
      %s25 = sadd.s32 %s18, 1
      %s26 = ssub.s32 %s18, %s25
      %p27 = scmp.eq.s32.totalorder %s26, 0
      %s29 = sadd.s32 %s28, 1
      %s30 = scalar_select %p27, %s28, %s29
      %p33 = pneg %p27
      %p34 = scmp.eq.s32.totalorder %s18, 3
      %p35 = por %p33, %p34
      %p36 = scmp.ne.s32.totalorder %s28, %s31
      %p37 = scmp.eq.s32.totalorder %s18, 0
      %p38 = por %p36, %p37
      %p39 = scmp.ne.s32.totalorder %s28, %s31
      %p40 = scmp.eq.s32.totalorder %s23, 3
      %p41 = por %p39, %p40
      %p42 = scmp.ne.s32.totalorder %s31, %s32
      %p43 = scmp.eq.s32.totalorder %s23, 0
      %p44 = por %p42, %p43
      %p45 = scmp.ne.s32.totalorder %s31, %s32
      %p46 = scmp.eq.s32.totalorder %s24, 3
      %p47 = por %p45, %p46
      %p49 = scmp.ne.s32.totalorder %s32, %s48
      %p50 = scmp.eq.s32.totalorder %s24, 0
      %p51 = por %p49, %p50
      %s52 = ssub.s32 %s18, %s25
      %p53 = scmp.eq.s32.totalorder %s52, 0
      %s55 = sadd.s32 %s54, 1
      %s56 = scalar_select %p53, %s54, %s55
      %p59 = pneg %p53
      %p60 = scmp.eq.s32.totalorder %s18, 3
      %p61 = por %p59, %p60
      %p62 = scmp.ne.s32.totalorder %s54, %s57
      %p63 = scmp.eq.s32.totalorder %s18, 0
      %p64 = por %p62, %p63
      %p65 = scmp.ne.s32.totalorder %s54, %s57
      %p66 = scmp.eq.s32.totalorder %s23, 3
      %p67 = por %p65, %p66
      %p68 = scmp.ne.s32.totalorder %s57, %s58
      %p69 = scmp.eq.s32.totalorder %s23, 0
      %p70 = por %p68, %p69
      %p71 = scmp.ne.s32.totalorder %s57, %s58
      %p72 = scmp.eq.s32.totalorder %s24, 3
      %p73 = por %p71, %p72
      %p75 = scmp.ne.s32.totalorder %s58, %s74
      %p76 = scmp.eq.s32.totalorder %s24, 0
      %p77 = por %p75, %p76
      %s78 = ssub.s32 %s18, %s25
      %p79 = scmp.eq.s32.totalorder %s78, 0
      %s81 = sadd.s32 %s80, 1
      %s82 = scalar_select %p79, %s80, %s81
      %p85 = pneg %p79
      %p86 = scmp.eq.s32.totalorder %s18, 3
      %p87 = por %p85, %p86
      %p88 = scmp.ne.s32.totalorder %s80, %s83
      %p89 = scmp.eq.s32.totalorder %s18, 0
      %p90 = por %p88, %p89
      %p91 = scmp.ne.s32.totalorder %s80, %s83
      %p92 = scmp.eq.s32.totalorder %s23, 3
      %p93 = por %p91, %p92
      %p94 = scmp.ne.s32.totalorder %s83, %s84
      %p95 = scmp.eq.s32.totalorder %s23, 0
      %p96 = por %p94, %p95
      %p97 = scmp.ne.s32.totalorder %s83, %s84
      %p98 = scmp.eq.s32.totalorder %s24, 3
      %p99 = por %p97, %p98
      %p101 = scmp.ne.s32.totalorder %s84, %s100
      %p102 = scmp.eq.s32.totalorder %s24, 0
      %p103 = por %p101, %p102
      %s104 = ssub.s32 %s18, %s25
      %p105 = scmp.eq.s32.totalorder %s104, 0
      %s107 = sadd.s32 %s106, 1
      %s108 = scalar_select %p105, %s106, %s107
      %p111 = pneg %p105
      %p112 = scmp.eq.s32.totalorder %s18, 3
      %p113 = por %p111, %p112
      %p114 = scmp.ne.s32.totalorder %s106, %s109
      %p115 = scmp.eq.s32.totalorder %s18, 0
      %p116 = por %p114, %p115
      %p117 = scmp.ne.s32.totalorder %s106, %s109
      %p118 = scmp.eq.s32.totalorder %s23, 3
      %p119 = por %p117, %p118
      %p120 = scmp.ne.s32.totalorder %s109, %s110
      %p121 = scmp.eq.s32.totalorder %s23, 0
      %p122 = por %p120, %p121
      %p123 = scmp.ne.s32.totalorder %s109, %s110
      %p124 = scmp.eq.s32.totalorder %s24, 3
      %p125 = por %p123, %p124
      %p127 = scmp.ne.s32.totalorder %s110, %s126
      %p128 = scmp.eq.s32.totalorder %s24, 0
      %p129 = por %p127, %p128
      %p130 = scmp.le.s32.totalorder 1, %s18
      %p131 = scmp.lt.s32.totalorder %s18, 5
      %p132 = pnand %p130, %p131
      %p133 = pneg %p132
      // Predicated region
      $region9: #{tpu_custom_call.1} parent=5 // pred_check
        _
      $region10: #{tpu_custom_call.1} parent=5 // pred_check_branch
        %135 = sbr.rel (%p132) target = $region12
      $region11: #{tpu_custom_call.1} parent=5 // pred_region
        %s136 = ssub.s32 %s18, 1
      $region12: #{tpu_custom_call.1} parent=5 // pred_fallthru
        _
      %p137 = scmp.lt.s32.totalorder %s18, 4
      // Predicated region
      $region13: #{tpu_custom_call.1} parent=5 // pred_check
        %p138 = pneg %p137
      $region14: #{tpu_custom_call.1} parent=5 // pred_check_branch
        %140 = sbr.rel (%p138) target = $region16
      $region15: #{tpu_custom_call.1} parent=5 // pred_region
        // Predicated region
        $region17: #{tpu_custom_call.1} parent=15 // pred_check
          %p141 = pneg %p38
        $region18: #{tpu_custom_call.1} parent=15 // pred_check_branch
          %143 = sbr.rel (%p141) target = $region20
        $region19: #{tpu_custom_call.1} parent=15 // pred_region
          %s144 = sand.u32 %s28, 1
          %s145 = scalar_lea.sflag [#allocation3], %s144
          %s146 = sand.u32 %s28, 1
          %s147 = smul.addr %s146, 64
          %s148 = scalar_lea.vmem [#allocation2], %s147
          %s149 = smul.u32 4, %s18
          %s150 = ssub.s32 13, %s149
          %p151 = scmp.lt.s32.totalorder %s150, 4
          %s152 = scalar_select %p151, %s150, 4
          %s153 = smul.u32 8, %s152
          %s154 = smul.u32 %s153, 2
          %s155 = ssub.s32 64, %s154
          %s156 = sshll.u32 %s155, 4
          %157 = vsyncadd %s145, %s156
          %p158 = scmp.ne.s32.totalorder 0, %s154
          %s159 = smul.addr %s149, 2
          %s160 = smul.addr %s159, 8
          %s161 = scalar_lea.hbm %s0, %s160
          %s162 = smul.u32 16, %s152
          %s163 = sshll.u32 %s161, 4
          %s164 = int_to_ptr.hbm [resolvable:$true] %s163
          %s165 = sshll.u32 %s148, 4
          %s166 = int_to_ptr.vmem [resolvable:$true] %s165
          %s167 = sshll.u32 %s162, 4
          %171 = dma.hbm_to_vmem [thread:$0]  (%p158), %s164, %s167, %s166, %s145, 256, 256, 16
        $region20: #{tpu_custom_call.1} parent=15 // pred_fallthru
          _
        // Predicated region
        $region21: #{tpu_custom_call.1} parent=15 // pred_check
          %p172 = pneg %p64
        $region22: #{tpu_custom_call.1} parent=15 // pred_check_branch
          %174 = sbr.rel (%p172) target = $region24
        $region23: #{tpu_custom_call.1} parent=15 // pred_region
          %s175 = sand.u32 %s18, 1
          %s176 = scalar_lea.sflag [#allocation6], %s175
          %s177 = sand.u32 %s54, 1
          %s178 = smul.addr %s177, 64
          %s179 = scalar_lea.vmem [#allocation5], %s178
          %s180 = smul.u32 4, %s18
          %s181 = ssub.s32 13, %s180
          %p182 = scmp.lt.s32.totalorder %s181, 4
          %s183 = scalar_select %p182, %s181, 4
          %s184 = smul.u32 8, %s183
          %s185 = smul.u32 %s184, 2
          %s186 = ssub.s32 64, %s185
          %s187 = sshll.u32 %s186, 4
          %188 = vsyncadd %s176, %s187
          %p189 = scmp.ne.s32.totalorder 0, %s185
          %s190 = smul.addr %s180, 2
          %s191 = smul.addr %s190, 8
          %s192 = scalar_lea.hbm %s1, %s191
          %s193 = smul.u32 16, %s183
          %s194 = sshll.u32 %s192, 4
          %s195 = int_to_ptr.hbm [resolvable:$true] %s194
          %s196 = sshll.u32 %s179, 4
          %s197 = int_to_ptr.vmem [resolvable:$true] %s196
          %s198 = sshll.u32 %s193, 4
          %202 = dma.hbm_to_vmem [thread:$0]  (%p189), %s195, %s198, %s197, %s176, 256, 256, 16
        $region24: #{tpu_custom_call.1} parent=15 // pred_fallthru
          _
        // Predicated region
        $region25: #{tpu_custom_call.1} parent=15 // pred_check
          %p203 = pneg %p90
        $region26: #{tpu_custom_call.1} parent=15 // pred_check_branch
          %205 = sbr.rel (%p203) target = $region28
        $region27: #{tpu_custom_call.1} parent=15 // pred_region
          %s206 = sand.u32 %s18, 1
          %s207 = scalar_lea.sflag [#allocation6], %s206
          %s208 = sand.u32 %s80, 1
          %s209 = smul.addr %s208, 64
          %s210 = scalar_lea.vmem [#allocation7], %s209
          %s211 = smul.u32 4, %s18
          %s212 = ssub.s32 13, %s211
          %p213 = scmp.lt.s32.totalorder %s212, 4
          %s214 = scalar_select %p213, %s212, 4
          %s215 = smul.u32 8, %s214
          %s216 = smul.u32 %s215, 2
          %s217 = ssub.s32 64, %s216
          %s218 = sshll.u32 %s217, 4
          %219 = vsyncadd %s207, %s218
          %p220 = scmp.ne.s32.totalorder 0, %s216
          %s221 = smul.addr %s211, 2
          %s222 = smul.addr %s221, 8
          %s223 = scalar_lea.hbm %s2, %s222
          %s224 = smul.u32 16, %s214
          %s225 = sshll.u32 %s223, 4
          %s226 = int_to_ptr.hbm [resolvable:$true] %s225
          %s227 = sshll.u32 %s210, 4
          %s228 = int_to_ptr.vmem [resolvable:$true] %s227
          %s229 = sshll.u32 %s224, 4
          %233 = dma.hbm_to_vmem [thread:$0]  (%p220), %s226, %s229, %s228, %s207, 256, 256, 16
        $region28: #{tpu_custom_call.1} parent=15 // pred_fallthru
          _
      $region16: #{tpu_custom_call.1} parent=5 // pred_fallthru
        _
      %p234 = scmp.le.s32.totalorder 1, %s18
      %p235 = scmp.lt.s32.totalorder %s18, 5
      %p236 = pnand %p234, %p235
      %p237 = pneg %p236
      // Predicated region
      $region29: #{tpu_custom_call.1} parent=5 // pred_check
        _
      $region30: #{tpu_custom_call.1} parent=5 // pred_check_branch
        %239 = sbr.rel (%p236) target = $region32
      $region31: #{tpu_custom_call.1} parent=5 // pred_region
        %s240 = ssub.s32 %s18, 1
        %s241 = sand.u32 %s31, 1
        %s242 = scalar_lea.sflag [#allocation3], %s241
        %s243 = sand.u32 %s31, 1
        %s244 = smul.addr %s243, 64
        %s245 = scalar_lea.vmem [#allocation2], %s244
        // Predicated region
        $region33: #{tpu_custom_call.1} parent=31 // pred_check
          %p246 = pneg %p44
        $region34: #{tpu_custom_call.1} parent=31 // pred_check_branch
          %248 = sbr.rel (%p246) target = $region36
        $region35: #{tpu_custom_call.1} parent=31 // pred_region
          %250 = dma.done %s242, 1024
        $region36: #{tpu_custom_call.1} parent=31 // pred_fallthru
          _
        %s251 = sand.u32 %s23, 1
        %s252 = scalar_lea.sflag [#allocation6], %s251
        %s253 = sand.u32 %s57, 1
        %s254 = smul.addr %s253, 64
        %s255 = scalar_lea.vmem [#allocation5], %s254
        // Predicated region
        $region37: #{tpu_custom_call.1} parent=31 // pred_check
          %p256 = pneg %p70
        $region38: #{tpu_custom_call.1} parent=31 // pred_check_branch
          %258 = sbr.rel (%p256) target = $region40
        $region39: #{tpu_custom_call.1} parent=31 // pred_region
          %260 = dma.done %s252, 1024
        $region40: #{tpu_custom_call.1} parent=31 // pred_fallthru
          _
        %s261 = sand.u32 %s23, 1
        %s262 = scalar_lea.sflag [#allocation6], %s261
        %s263 = sand.u32 %s83, 1
        %s264 = smul.addr %s263, 64
        %s265 = scalar_lea.vmem [#allocation7], %s264
        // Predicated region
        $region41: #{tpu_custom_call.1} parent=31 // pred_check
          %p266 = pneg %p96
        $region42: #{tpu_custom_call.1} parent=31 // pred_check_branch
          %268 = sbr.rel (%p266) target = $region44
        $region43: #{tpu_custom_call.1} parent=31 // pred_region
          %270 = dma.done %s262, 1024
        $region44: #{tpu_custom_call.1} parent=31 // pred_fallthru
          _
        %s271 = sand.u32 %s31, 1
        %s272 = scalar_lea.sflag [#allocation3], %s271
        %s273 = sand.u32 %s31, 1
        %s274 = smul.addr %s273, 64
        %s275 = scalar_lea.vmem [#allocation2], %s274
        %p276 = pneg %p44
        %p277 = pneg %p41
        %s278 = sand.u32 %s23, 1
        %s279 = scalar_lea.sflag [#allocation6], %s278
        %s280 = sand.u32 %s57, 1
        %s281 = smul.addr %s280, 64
        %s282 = scalar_lea.vmem [#allocation5], %s281
        %p283 = pneg %p70
        %p284 = pneg %p67
        %s285 = sand.u32 %s23, 1
        %s286 = scalar_lea.sflag [#allocation6], %s285
        %s287 = sand.u32 %s83, 1
        %s288 = smul.addr %s287, 64
        %s289 = scalar_lea.vmem [#allocation7], %s288
        %p290 = pneg %p96
        %p291 = pneg %p93
        %p292 = pneg %p122
        %p293 = pneg %p119
        %s294 = sand.u32 %s109, 1
        %s295 = scalar_lea.sflag [#allocation4], %s294
        %s296 = sand.u32 %s109, 1
        %s297 = smul.addr %s296, 8
        %s298 = scalar_lea.vmem [#allocation8], %s297
        %s299 = smul.u32 4, %s23
        %s300 = ssub.s32 13, %s299
        %p301 = scmp.lt.s32.totalorder %s300, 4
        %s302 = scalar_select %p301, %s300, 4
        %s303 = smul.u32 8, %s302
        %s304 = smul.u32 %s303, 2
        %s305 = smul.u32 4, %s23
        %s306 = ssub.s32 13, %s305
        %p307 = scmp.lt.s32.totalorder %s306, 4
        %s308 = scalar_select %p307, %s306, 4
        %s309 = smul.u32 8, %s308
        %s310 = smul.u32 %s309, 2
        %s311 = smul.u32 4, %s23
        %s312 = ssub.s32 13, %s311
        %p313 = scmp.lt.s32.totalorder %s312, 4
        %s314 = scalar_select %p313, %s312, 4
        %s315 = smul.u32 8, %s314
        %s316 = smul.u32 %s315, 2
        %v317 = vld [vmem:[%s245] sm:$0xff]
        %v318 = vld [vmem:[%s245 + $0x8] sm:$0xff]
        %v319 = vld [vmem:[%s245 + $0x10] sm:$0xff]
        %v320 = vld [vmem:[%s245 + $0x18] sm:$0xff]
        %v321 = vld [vmem:[%s245 + $0x20] sm:$0xff]
        %v322 = vld [vmem:[%s245 + $0x28] sm:$0xff]
        %v323 = vld [vmem:[%s245 + $0x30] sm:$0xff]
        %v324 = vld [vmem:[%s245 + $0x38] sm:$0xff]
        %v325 = vld [vmem:[%s255] sm:$0xff]
        %v326 = vld [vmem:[%s255 + $0x8] sm:$0xff]
        %v327 = vld [vmem:[%s255 + $0x10] sm:$0xff]
        %v328 = vld [vmem:[%s255 + $0x18] sm:$0xff]
        %v329 = vld [vmem:[%s255 + $0x20] sm:$0xff]
        %v330 = vld [vmem:[%s255 + $0x28] sm:$0xff]
        %v331 = vld [vmem:[%s255 + $0x30] sm:$0xff]
        %v332 = vld [vmem:[%s255 + $0x38] sm:$0xff]
        %v333 = vld [vmem:[%s265] sm:$0xff]
        %v334 = vld [vmem:[%s265 + $0x8] sm:$0xff]
        %v335 = vld [vmem:[%s265 + $0x10] sm:$0xff]
        %v336 = vld [vmem:[%s265 + $0x18] sm:$0xff]
        %v337 = vld [vmem:[%s265 + $0x20] sm:$0xff]
        %v338 = vld [vmem:[%s265 + $0x28] sm:$0xff]
        %v339 = vld [vmem:[%s265 + $0x30] sm:$0xff]
        %v340 = vld [vmem:[%s265 + $0x38] sm:$0xff]
        %v341 = vsub.f32 %v317, %v325
        %v342 = vsub.f32 %v318, %v326
        %v343 = vsub.f32 %v319, %v327
        %v344 = vsub.f32 %v320, %v328
        %v345 = vsub.f32 %v321, %v329
        %v346 = vsub.f32 %v322, %v330
        %v347 = vsub.f32 %v323, %v331
        %v348 = vsub.f32 %v324, %v332
        %v349 = vadd.f32 %v341, 1e-06
        %v350 = vadd.f32 %v342, 1e-06
        %v351 = vadd.f32 %v343, 1e-06
        %v352 = vadd.f32 %v344, 1e-06
        %v353 = vadd.f32 %v345, 1e-06
        %v354 = vadd.f32 %v346, 1e-06
        %v355 = vadd.f32 %v347, 1e-06
        %v356 = vadd.f32 %v348, 1e-06
        %v357 = vmul.f32 %v349, %v349
        %v358 = vmul.f32 %v350, %v350
        %v359 = vmul.f32 %v351, %v351
        %v360 = vmul.f32 %v352, %v352
        %v361 = vmul.f32 %v353, %v353
        %v362 = vmul.f32 %v354, %v354
        %v363 = vmul.f32 %v355, %v355
        %v364 = vmul.f32 %v356, %v356
        %v365 = vadd.f32 %v357, %v358
        %366 = vadd.xlane.f32.xlu0 %v365
        %v367 = vpop.xlane.xlu0 %366
        %v368 = vadd.f32 %v359, %v360
        %369 = vadd.xlane.f32.xlu0 %v368
        %v370 = vpop.xlane.xlu0 %369
        %v371 = vadd.f32 %v361, %v362
        %372 = vadd.xlane.f32.xlu0 %v371
        %v373 = vpop.xlane.xlu0 %372
        %v374 = vadd.f32 %v363, %v364
        %375 = vadd.xlane.f32.xlu0 %v374
        %v376 = vpop.xlane.xlu0 %375
        %v377 = vrsqrt.pop %v367
        %v378 = vmul.f32 %v377, %v367
        %v379 = vmul.f32 %v378, %v377
        %v380 = vmul.f32 0.5, %v379
        %v381 = vsub.f32 1.5, %v380
        %v382 = vmul.f32 %v377, %v381
        %v383 = vmul.f32 %v367, %v382
        %vm384 = vcmp.eq.f32.partialorder %v367, inf
        %v385 = vsel %vm384, %v367, %v383
        %vm386 = vcmp.eq.f32.partialorder %v367, 0.0
        %v387 = vand.u32 %v367, 2147483648
        %v388 = vsel %vm386, %v387, %v385
        %v389 = vrsqrt.pop %v370
        %v390 = vmul.f32 %v389, %v370
        %v391 = vmul.f32 %v390, %v389
        %v392 = vmul.f32 0.5, %v391
        %v393 = vsub.f32 1.5, %v392
        %v394 = vmul.f32 %v389, %v393
        %v395 = vmul.f32 %v370, %v394
        %vm396 = vcmp.eq.f32.partialorder %v370, inf
        %v397 = vsel %vm396, %v370, %v395
        %vm398 = vcmp.eq.f32.partialorder %v370, 0.0
        %v399 = vand.u32 %v370, 2147483648
        %v400 = vsel %vm398, %v399, %v397
        %v401 = vrsqrt.pop %v373
        %v402 = vmul.f32 %v401, %v373
        %v403 = vmul.f32 %v402, %v401
        %v404 = vmul.f32 0.5, %v403
        %v405 = vsub.f32 1.5, %v404
        %v406 = vmul.f32 %v401, %v405
        %v407 = vmul.f32 %v373, %v406
        %vm408 = vcmp.eq.f32.partialorder %v373, inf
        %v409 = vsel %vm408, %v373, %v407
        %vm410 = vcmp.eq.f32.partialorder %v373, 0.0
        %v411 = vand.u32 %v373, 2147483648
        %v412 = vsel %vm410, %v411, %v409
        %v413 = vrsqrt.pop %v376
        %v414 = vmul.f32 %v413, %v376
        %v415 = vmul.f32 %v414, %v413
        %v416 = vmul.f32 0.5, %v415
        %v417 = vsub.f32 1.5, %v416
        %v418 = vmul.f32 %v413, %v417
        %v419 = vmul.f32 %v376, %v418
        %vm420 = vcmp.eq.f32.partialorder %v376, inf
        %v421 = vsel %vm420, %v376, %v419
        %vm422 = vcmp.eq.f32.partialorder %v376, 0.0
        %v423 = vand.u32 %v376, 2147483648
        %v424 = vsel %vm422, %v423, %v421
        %v425 = vsub.f32 %v317, %v333
        %v426 = vsub.f32 %v318, %v334
        %v427 = vsub.f32 %v319, %v335
        %v428 = vsub.f32 %v320, %v336
        %v429 = vsub.f32 %v321, %v337
        %v430 = vsub.f32 %v322, %v338
        %v431 = vsub.f32 %v323, %v339
        %v432 = vsub.f32 %v324, %v340
        %v433 = vadd.f32 %v425, 1e-06
        %v434 = vadd.f32 %v426, 1e-06
        %v435 = vadd.f32 %v427, 1e-06
        %v436 = vadd.f32 %v428, 1e-06
        %v437 = vadd.f32 %v429, 1e-06
        %v438 = vadd.f32 %v430, 1e-06
        %v439 = vadd.f32 %v431, 1e-06
        %v440 = vadd.f32 %v432, 1e-06
        %v441 = vmul.f32 %v433, %v433
        %v442 = vmul.f32 %v434, %v434
        %v443 = vmul.f32 %v435, %v435
        %v444 = vmul.f32 %v436, %v436
        %v445 = vmul.f32 %v437, %v437
        %v446 = vmul.f32 %v438, %v438
        %v447 = vmul.f32 %v439, %v439
        %v448 = vmul.f32 %v440, %v440
        %v449 = vadd.f32 %v441, %v442
        %450 = vadd.xlane.f32.xlu0 %v449
        %v451 = vpop.xlane.xlu0 %450
        %v452 = vadd.f32 %v443, %v444
        %453 = vadd.xlane.f32.xlu0 %v452
        %v454 = vpop.xlane.xlu0 %453
        %v455 = vadd.f32 %v445, %v446
        %456 = vadd.xlane.f32.xlu0 %v455
        %v457 = vpop.xlane.xlu0 %456
        %v458 = vadd.f32 %v447, %v448
        %459 = vadd.xlane.f32.xlu0 %v458
        %v460 = vpop.xlane.xlu0 %459
        %v461 = vrsqrt.pop %v451
        %v462 = vmul.f32 %v461, %v451
        %v463 = vmul.f32 %v462, %v461
        %v464 = vmul.f32 0.5, %v463
        %v465 = vsub.f32 1.5, %v464
        %v466 = vmul.f32 %v461, %v465
        %v467 = vmul.f32 %v451, %v466
        %vm468 = vcmp.eq.f32.partialorder %v451, inf
        %v469 = vsel %vm468, %v451, %v467
        %vm470 = vcmp.eq.f32.partialorder %v451, 0.0
        %v471 = vand.u32 %v451, 2147483648
        %v472 = vsel %vm470, %v471, %v469
        %v473 = vrsqrt.pop %v454
        %v474 = vmul.f32 %v473, %v454
        %v475 = vmul.f32 %v474, %v473
        %v476 = vmul.f32 0.5, %v475
        %v477 = vsub.f32 1.5, %v476
        %v478 = vmul.f32 %v473, %v477
        %v479 = vmul.f32 %v454, %v478
        %vm480 = vcmp.eq.f32.partialorder %v454, inf
        %v481 = vsel %vm480, %v454, %v479
        %vm482 = vcmp.eq.f32.partialorder %v454, 0.0
        %v483 = vand.u32 %v454, 2147483648
        %v484 = vsel %vm482, %v483, %v481
        %v485 = vrsqrt.pop %v457
        %v486 = vmul.f32 %v485, %v457
        %v487 = vmul.f32 %v486, %v485
        %v488 = vmul.f32 0.5, %v487
        %v489 = vsub.f32 1.5, %v488
        %v490 = vmul.f32 %v485, %v489
        %v491 = vmul.f32 %v457, %v490
        %vm492 = vcmp.eq.f32.partialorder %v457, inf
        %v493 = vsel %vm492, %v457, %v491
        %vm494 = vcmp.eq.f32.partialorder %v457, 0.0
        %v495 = vand.u32 %v457, 2147483648
        %v496 = vsel %vm494, %v495, %v493
        %v497 = vrsqrt.pop %v460
        %v498 = vmul.f32 %v497, %v460
        %v499 = vmul.f32 %v498, %v497
        %v500 = vmul.f32 0.5, %v499
        %v501 = vsub.f32 1.5, %v500
        %v502 = vmul.f32 %v497, %v501
        %v503 = vmul.f32 %v460, %v502
        %vm504 = vcmp.eq.f32.partialorder %v460, inf
        %v505 = vsel %vm504, %v460, %v503
        %vm506 = vcmp.eq.f32.partialorder %v460, 0.0
        %v507 = vand.u32 %v460, 2147483648
        %v508 = vsel %vm506, %v507, %v505
        %v509 = vsub.f32 %v388, %v472
        %v510 = vsub.f32 %v400, %v484
        %v511 = vsub.f32 %v412, %v496
        %v512 = vsub.f32 %v424, %v508
        %v513 = vadd.f32 %v509, 0.2
        %v514 = vadd.f32 %v510, 0.2
        %v515 = vadd.f32 %v511, 0.2
        %v516 = vadd.f32 %v512, 0.2
        %v517 = vmax.f32 %v513, 0.0
        %v518 = vmax.f32 %v514, 0.0
        %v519 = vmax.f32 %v515, 0.0
        %v520 = vmax.f32 %v516, 0.0
        %s521 = smul.u32 %s23, 32
        %v522 = vlaneseq
        %v523 = vshrl.u32 %v522, 7
        %v524 = vadd.s32 %v523, 8
        %v525 = vadd.s32 %v523, 16
        %v526 = vadd.s32 %v523, 24
        %v527 = vstv %s521
        %v528 = vadd.s32 %v527, %v523
        %v529 = vadd.s32 %v527, %v524
        %v530 = vadd.s32 %v527, %v525
        %v531 = vadd.s32 %v527, %v526
        %vm532 = vcmp.lt.s32.totalorder %v528, 100
        %vm533 = vcmp.lt.s32.totalorder %v529, 100
        %vm534 = vcmp.lt.s32.totalorder %v530, 100
        %vm535 = vcmp.lt.s32.totalorder %v531, 100
        %v536 = vsel %vm532, %v517, 0.0
        %v537 = vsel %vm533, %v518, 0.0
        %v538 = vsel %vm534, %v519, 0.0
        %v539 = vsel %vm535, %v520, 0.0
        %vm540 = vcmask 7168
        %v541 = vsel %vm540, %v536, 0.0
        %v542 = vsel %vm540, %v537, 0.0
        %v543 = vadd.f32 %v541, %v542
        %v544 = vsel %vm540, %v538, 0.0
        %v545 = vadd.f32 %v543, %v544
        %v546 = vsel %vm540, %v539, 0.0
        %v547 = vadd.f32 %v545, %v546
        %548 = vadd.xlane.f32.xlu0 %v547
        %v549 = vpop.xlane.xlu0 %548
        %v550 = vrot.slane %v549, 4
        %v551 = vadd.f32 %v549, %v550
        %v552 = vrot.slane %v551, 2
        %v553 = vadd.f32 %v551, %v552
        %v554 = vrot.slane %v553, 1
        %v555 = vadd.f32 %v553, %v554
        %s556 = vtos %v555
        %v557 = vstv %s556
        %558 = vst [vmem:[%s298] sm:$0xff] %v557
        %s559 = sand.u32 %s109, 1
        %s560 = scalar_lea.sflag [#allocation4], %s559
        %s561 = sand.u32 %s109, 1
        %s562 = smul.addr %s561, 8
        %s563 = scalar_lea.vmem [#allocation8], %s562
        // Predicated region
        $region45: #{tpu_custom_call.1} parent=31 // pred_check
          %p564 = pneg %p119
        $region46: #{tpu_custom_call.1} parent=31 // pred_check_branch
          %566 = sbr.rel (%p564) target = $region48
        $region47: #{tpu_custom_call.1} parent=31 // pred_region
          %568 = vsyncadd %s560, 0
          %s569 = smul.addr %s23, 8
          %s570 = scalar_lea.hbm %s3, %s569
          %s572 = sshll.u32 %s563, 4
          %s573 = int_to_ptr.vmem [resolvable:$true] %s572
          %s574 = sshll.u32 %s570, 4
          %s575 = int_to_ptr.hbm [resolvable:$true] %s574
          %577 = dma.vmem_to_hbm [thread:$0]  %s573, 128, %s575, %s560
        $region48: #{tpu_custom_call.1} parent=31 // pred_fallthru
          _
      $region32: #{tpu_custom_call.1} parent=5 // pred_fallthru
        _
      %p578 = scmp.le.s32.totalorder 2, %s18
      // Predicated region
      $region49: #{tpu_custom_call.1} parent=5 // pred_check
        %p579 = pneg %p578
      $region50: #{tpu_custom_call.1} parent=5 // pred_check_branch
        %581 = sbr.rel (%p579) target = $region52
      $region51: #{tpu_custom_call.1} parent=5 // pred_region
        %s582 = ssub.s32 %s18, 2
        // Predicated region
        $region53: #{tpu_custom_call.1} parent=51 // pred_check
          %p583 = pneg %p125
        $region54: #{tpu_custom_call.1} parent=51 // pred_check_branch
          %585 = sbr.rel (%p583) target = $region56
        $region55: #{tpu_custom_call.1} parent=51 // pred_region
          %s586 = sand.u32 %s110, 1
          %s587 = scalar_lea.sflag [#allocation4], %s586
          %s588 = sand.u32 %s110, 1
          %s589 = smul.addr %s588, 8
          %s590 = scalar_lea.vmem [#allocation8], %s589
          %592 = dma.done %s587, 128
        $region56: #{tpu_custom_call.1} parent=51 // pred_fallthru
          _
      $region52: #{tpu_custom_call.1} parent=5 // pred_fallthru
        _
    $region6: #{tpu_custom_call.1} parent=1 // loop_footer
      %s22 = sadd.s32 1, %s18
    $region7: #{tpu_custom_call.1} parent=1 // loop_footer_branch
      %17 = sbr.rel target = $region3
    $region8: #{tpu_custom_call.1} parent=1 // loop_exit
      _
    %593 = vsyncpa [#allocation3], 1
    %s594 = scalar_lea.sflag [#allocation3], 1
    %595 = vsyncpa %s594, 1
    %596 = vsyncpa [#allocation6], 1
    %s597 = scalar_lea.sflag [#allocation6], 1
    %598 = vsyncpa %s597, 1
    %599 = vsyncpa [#allocation4], 1
    %s600 = scalar_lea.sflag [#allocation4], 1
    %601 = vsyncpa %s600, 1

</llo_original>
